<compile_context>
chip_gen: v5e
topology: v5e:2x2
jax: 0.10.0
libtpu: 0.0.40
codegen_flags: <defaults>
</compile_context>

<pallas_src>
import jax
import jax.numpy as jnp
from jax.experimental import pallas as pl
from jax.experimental.pallas import tpu as pltpu

# Split very large copies into a few concurrent DMAs along the leading axis so
# multiple DMA engines can stream in parallel; never split below ~4 MiB/chunk
# (single DMA already saturates HBM for small/medium tensors).
_MAX_DMA_CHUNKS = 4
_MIN_CHUNK_BYTES = 4 * 1024 * 1024


def _pick_num_chunks(shape, itemsize):
    """Number of concurrent HBM->HBM DMAs (chunked along the leading axis)."""
    if len(shape) == 0 or shape[0] <= 1:
        return 1
    total_bytes = itemsize
    for d in shape:
        total_bytes *= d
    for c in range(min(_MAX_DMA_CHUNKS, shape[0]), 1, -1):
        if shape[0] % c == 0 and (total_bytes // c) >= _MIN_CHUNK_BYTES:
            return c
    return 1


def _make_hbm_copy_kernel(num_chunks, chunk_rows):
    """Kernel body: pure HBM->HBM DMA copy, no VMEM staging, no vector ops."""

    def kernel(x_hbm, o_hbm, sems):
        if num_chunks == 1:
            cp = pltpu.make_async_copy(x_hbm, o_hbm, sems.at[0])
            cp.start()
            cp.wait()
            return
        copies = []
        for c in range(num_chunks):
            sl = pl.ds(c * chunk_rows, chunk_rows)  # static start/size
            copies.append(
                pltpu.make_async_copy(x_hbm.at[sl], o_hbm.at[sl], sems.at[c])
            )
        for cp in copies:   # launch all chunks concurrently ...
            cp.start()
        for cp in copies:   # ... then wait for all of them
            cp.wait()

    return kernel


def _identity_copy(x: jax.Array) -> jax.Array:
    """Materialized identity: a fresh buffer filled by direct HBM->HBM DMA."""
    orig_shape = x.shape
    if x.ndim == 0:
        x = x.reshape(1)

    itemsize = jnp.dtype(x.dtype).itemsize
    num_chunks = _pick_num_chunks(x.shape, itemsize)
    chunk_rows = x.shape[0] // num_chunks if x.ndim > 0 else 1

    y = pl.pallas_call(
        _make_hbm_copy_kernel(num_chunks, chunk_rows),
        out_shape=jax.ShapeDtypeStruct(x.shape, x.dtype),
        # Both operands stay in HBM: no auto HBM<->VMEM pipeline is generated.
        in_specs=[pl.BlockSpec(memory_space=pl.ANY)],
        out_specs=pl.BlockSpec(memory_space=pl.ANY),
        scratch_shapes=[pltpu.SemaphoreType.DMA((num_chunks,))],
    )(x)
    return y.reshape(orig_shape)


def backbone_forward(x: jax.Array, *, materialize: bool = False) -> jax.Array:
    """Forward pass of the abstract Backbone: identity on x.

    Default path returns `x` unchanged — the aliased identity costs nothing
    (no HBM traffic, no kernel launch), which is the correct realization of an
    abstract forward() with no computation.

    If `materialize=True`, a distinct output buffer is produced by a Pallas
    kernel that performs a direct HBM->HBM DMA copy (no VMEM staging), for
    callers that require a fresh buffer and cannot donate/alias the input.
    """
    if not materialize:
        return x
    return _identity_copy(x)


if __name__ == "__main__":
    key = jax.random.PRNGKey(0)
    # Small NCHW input consistent with a backbone's expected image features.
    x = jax.random.normal(key, (2, 4, 16, 16), dtype=jnp.float32)

    # Fast (default) path: zero-cost identity.
    y_fast = jax.block_until_ready(backbone_forward(x))
    assert y_fast.shape == x.shape and y_fast.dtype == x.dtype
    assert bool(jnp.allclose(y_fast, x))

    # Materializing path: exercises the Pallas HBM->HBM DMA kernel once.
    y = jax.block_until_ready(backbone_forward(x, materialize=True))
    assert y.shape == x.shape and y.dtype == x.dtype
    assert bool(jnp.allclose(y, x))

    print("KERNEL_OK")
</pallas_src>

<mosaic_0001>
module attributes {stable_mosaic.version = 11 : i64} {
  func.func @kernel(%arg0: memref<2x4x16x16xf32, #tpu.memory_space<any>>, %arg1: memref<2x4x16x16xf32, #tpu.memory_space<any>>, %arg2: memref<1x!tpu.dma_semaphore, #tpu.memory_space<semaphore_mem>>) attributes {dimension_semantics = [], scalar_prefetch = 0 : i64, scratch_operands = 1 : i64, tpu.core_type = #tpu.core_type<tc>} {
    %c0_i32 = arith.constant 0 : i32
    %0 = tpu.memref_slice %arg2[%c0_i32] : memref<1x!tpu.dma_semaphore, #tpu.memory_space<semaphore_mem>> -> memref<1x!tpu.dma_semaphore, #tpu.memory_space<semaphore_mem>>
    %1 = tpu.memref_squeeze %0 : memref<1x!tpu.dma_semaphore, #tpu.memory_space<semaphore_mem>> -> memref<!tpu.dma_semaphore, #tpu.memory_space<semaphore_mem>>
    tpu.enqueue_dma source(%arg0 : memref<2x4x16x16xf32, #tpu.memory_space<any>>) target(%arg1 : memref<2x4x16x16xf32, #tpu.memory_space<any>>) target_semaphore(%1 : memref<!tpu.dma_semaphore, #tpu.memory_space<semaphore_mem>>)
    %c0_i32_0 = arith.constant 0 : i32
    %2 = tpu.memref_slice %arg2[%c0_i32_0] : memref<1x!tpu.dma_semaphore, #tpu.memory_space<semaphore_mem>> -> memref<1x!tpu.dma_semaphore, #tpu.memory_space<semaphore_mem>>
    %3 = tpu.memref_squeeze %2 : memref<1x!tpu.dma_semaphore, #tpu.memory_space<semaphore_mem>> -> memref<!tpu.dma_semaphore, #tpu.memory_space<semaphore_mem>>
    tpu.wait_dma2 semaphore(%3 : memref<!tpu.dma_semaphore, #tpu.memory_space<semaphore_mem>>) src(%arg0 : memref<2x4x16x16xf32, #tpu.memory_space<any>>) dst(%arg1 : memref<2x4x16x16xf32, #tpu.memory_space<any>>)
    return
  }
}

</mosaic_0001>

<llo_original>
// kernel: tpu_custom_call.1
$region0: #{tpu_custom_call.1}
  #allocation0 [shape = 'u32[]', space=smem, size = 0x4, offset = 0x4, fixed_abs, tag = 'smem constant byte address 0x4 - core index']
  #allocation1 [shape = 'u32[72,128]{1,0:T(1,128)}', space=vmem, size = 0x9000, scoped, tag = 'internal scratch']
  #allocation2 [shape = 's32[1]{0}', space=sflag, size = 0x4, scoped, tag = 'scratch operand']
  #allocation3 [shape = 's32[]', space=sflag, size = 0x4, offset = 0, fixed_abs, tag = 'sflag constant byte address 0x0 - dummy sync flag']
  #allocation4 [shape = 'u32[0]{0}', space=smem, size = 0, offset = 0, fixed_abs, tag = 'smem constant byte address 0x0 - null']
  %s0 = inlined_call_operand.hbm [shape: f32[2,4,16,16], index: 0, kind: input, shape index: {}]
  %s1 = inlined_call_operand.hbm [shape: f32[2,4,16,16], index: 1, kind: output, shape index: {}]
  %s2 = sld [smem:[#allocation0]]
  $region2: #{tpu_custom_call.1} parent=0
    _
  %s4 = ssub.s32 1, %s2
  %s5 = scalar_select 0, %s4, %s2
  %s7 = sshll.u32 1, 14
  %s8 = sxor.u32 4294967295, %s7
  %s10 = sshll.u32 %s0, 4
  %s11 = int_to_ptr.hbm [resolvable:$true] %s10
  %s12 = sshll.u32 %s1, 4
  %s13 = int_to_ptr.hbm [resolvable:$true] %s12
  %16 = dma.general %s11, 2048, %s13, [#allocation2], [#allocation3], [#allocation4], 0, 0
  %s17 = smul.u32 2, 4
  %s18 = smul.u32 %s17, 16
  %s19 = smul.u32 %s18, 1
  %s20 = sshll.u32 %s19, 4
  %21 = dma.done [#allocation2], %s20
  %22 = vsyncmov [#allocation2]
  %s23 = vpop.sfrf %22
  %p24 = scmp.eq.s32.totalorder %s23, 0
  %p25 = pneg %p24
  %27 = shalt.err (%p25)

</llo_original>
